<compile_context>
chip_gen: v7x
topology: tpu7x:2x2x1
jax: 0.10.0
libtpu: 0.0.40
codegen_flags: <defaults>
</compile_context>

<pallas_src>
import functools

import jax
import jax.numpy as jnp
from jax import lax
from jax.experimental import pallas as pl
from jax.experimental.pallas import tpu as pltpu


def _ssam_kernel(gamma_ref, xq_ref, xkv_ref, out_ref,
                 m_sc, l_sc, acc_sc, *, tk, n_valid, n_padded):
    """One (batch b, query-tile qi, key-tile ki) grid step.

    gamma_ref : (1,)        f32 SMEM scalar
    xq_ref    : (1, C, tq)  f32  -- query columns + exact residual (resident over ki)
    xkv_ref   : (1, C, tk)  bf16 -- key == value columns (streamed over ki)
    out_ref   : (1, C, tq)  f32  -- gamma * attn_out + x   (lane-dense last dim)
    scratch   : m (1, tq), l (1, tq), acc (C, tq) -- online-softmax state, f32
    """
    ki = pl.program_id(2)

    @pl.when(ki == 0)
    def _():
        m_sc[...] = jnp.full_like(m_sc, -jnp.inf)
        l_sc[...] = jnp.zeros_like(l_sc)
        acc_sc[...] = jnp.zeros_like(acc_sc)

    q_f32 = xq_ref[0]                        # (C, tq) f32
    kv = xkv_ref[0]                          # (C, tk) bf16
    q_bf = q_f32.astype(jnp.bfloat16)        # tiny cast (C*tq elems) per step

    # energy_t[m, n] = sum_c x[c, m] * x[c, n]   (keys on sublanes, queries on lanes)
    # bf16 MXU operands, f32 accumulation.
    energy_t = lax.dot_general(
        kv, q_bf, (((0,), (0,)), ((), ())),
        preferred_element_type=jnp.float32)                      # (tk, tq)

    if n_valid != n_padded:
        # Padded key rows -> energy = +inf  =>  logit -inf  =>  probability 0,
        # and the running max ignores them (min over keys skips +inf).
        key_idx = lax.broadcasted_iota(jnp.int32, energy_t.shape, 0) + ki * tk
        energy_t = jnp.where(key_idx < n_valid, energy_t, jnp.inf)

    # Logits are s = -energy (softmax(rowmax(E) - E) == softmax(-E)); the per-query
    # running max of s over keys is -min(E) -- one reduction, no N x N temporaries.
    tile_max = -jnp.min(energy_t, axis=0, keepdims=True)         # (1, tq)
    m_new = jnp.maximum(m_sc[...], tile_max)                     # (1, tq)
    alpha = jnp.exp(m_sc[...] - m_new)                           # (1, tq)
    p_t = jnp.exp((-m_new) - energy_t)                           # (tk, tq) f32, exp(s - m)

    l_sc[...] = alpha * l_sc[...] + jnp.sum(p_t, axis=0, keepdims=True)
    # Second GEMM in natural (C,tk)@(tk,tq) form; bf16 operands, f32 accumulate.
    acc_sc[...] = alpha * acc_sc[...] + jnp.dot(
        kv, p_t.astype(jnp.bfloat16), preferred_element_type=jnp.float32)
    m_sc[...] = m_new

    @pl.when(ki == pl.num_programs(2) - 1)
    def _():
        inv_l = pl.reciprocal(l_sc[...], approx=True)            # EUP vrcp
        attn_out = acc_sc[...] * inv_l                           # (C, tq)
        out_ref[0] = (gamma_ref[0] * attn_out + q_f32).astype(out_ref.dtype)


def ssam_pallas(x_nchw, gamma, *, tq=256, tk=512):
    """x_nchw: (B, C, H, W) float32; gamma: (1,) float32 (the module parameter)."""
    B, C, H, W = x_nchw.shape
    N = H * W
    LANE = 128

    gamma = jnp.asarray(gamma, jnp.float32).reshape((1,))

    # Native (B, C, N) layout everywhere: no wrapper transposes on input or output.
    x_cn = x_nchw.reshape(B, C, N).astype(jnp.float32)

    # Pad N to a lane multiple instead of falling back to full-N tiles (VMEM hazard).
    n_pad = ((N + LANE - 1) // LANE) * LANE
    if n_pad != N:
        x_cn = jnp.pad(x_cn, ((0, 0), (0, 0), (0, n_pad - N)))

    def _pick(t):
        # Largest multiple of 128 that is <= t and divides n_pad (>= 128 always works).
        t = max(LANE, (min(t, n_pad) // LANE) * LANE)
        while n_pad % t:
            t -= LANE
        return t

    tq = _pick(tq)
    tk = _pick(tk)

    x_bf = x_cn.astype(jnp.bfloat16)       # single bf16 k/v stream (halved HBM bytes)

    grid = (B, n_pad // tq, n_pad // tk)
    kernel = functools.partial(_ssam_kernel, tk=tk, n_valid=N, n_padded=n_pad)

    out_cn = pl.pallas_call(
        kernel,
        out_shape=jax.ShapeDtypeStruct((B, C, n_pad), jnp.float32),
        grid=grid,
        in_specs=[
            pl.BlockSpec(memory_space=pltpu.MemorySpace.SMEM),       # gamma
            pl.BlockSpec((1, C, tq), lambda b, qi, ki: (b, 0, qi)),  # x f32 (q + residual)
            pl.BlockSpec((1, C, tk), lambda b, qi, ki: (b, 0, ki)),  # x bf16 (k == v)
        ],
        out_specs=pl.BlockSpec((1, C, tq), lambda b, qi, ki: (b, 0, qi)),
        scratch_shapes=[
            pltpu.VMEM((1, tq), jnp.float32),   # running max m
            pltpu.VMEM((1, tq), jnp.float32),   # running denominator l
            pltpu.VMEM((C, tq), jnp.float32),   # output accumulator (lane-dense)
        ],
        compiler_params=pltpu.CompilerParams(
            dimension_semantics=("parallel", "parallel", "arbitrary")),
    )(gamma, x_cn, x_bf)

    if n_pad != N:
        out_cn = out_cn[:, :, :N]
    return out_cn.reshape(B, C, H, W)


def ssam_reference(x_nchw, gamma):
    """Pure-JAX reference mirroring the PyTorch forward exactly."""
    B, C, H, W = x_nchw.shape
    N = H * W
    xf = x_nchw.reshape(B, C, N)
    query = jnp.transpose(xf, (0, 2, 1))          # (B, N, C)
    key = xf                                      # (B, C, N)
    value = jnp.transpose(xf, (0, 2, 1))          # (B, N, C)
    energy = jnp.einsum("bnc,bcm->bnm", query, key)
    energy_new = jnp.max(energy, axis=-1, keepdims=True) - energy
    attention = jax.nn.softmax(energy_new, axis=-1)
    out = jnp.einsum("bnm,bmc->bnc", attention, value)
    out = jnp.transpose(out, (0, 2, 1)).reshape(B, C, H, W)
    return gamma.reshape(())[...] * out + x_nchw


if __name__ == "__main__":
    key = jax.random.PRNGKey(0)
    B, C, H, W = 2, 4, 16, 16                     # N = 256
    x = jax.random.normal(key, (B, C, H, W), dtype=jnp.float32)

    # Module __init__: gamma = nn.Parameter(torch.zeros(1)) -> output is exactly x.
    gamma0 = jnp.zeros((1,), dtype=jnp.float32)
    out0 = jax.block_until_ready(ssam_pallas(x, gamma0))
    ref0 = ssam_reference(x, gamma0)
    assert jnp.allclose(out0, ref0, atol=1e-5, rtol=1e-5), "mismatch with gamma=0"

    # Full attention path. bf16 GEMMs + approx reciprocal -> relaxed tolerance.
    gamma1 = jnp.array([0.5], dtype=jnp.float32)
    ref1 = ssam_reference(x, gamma1)

    # (a) small tiles: grid (2, 2, 2) exercises multi-tile online-softmax accumulation
    out1a = jax.block_until_ready(ssam_pallas(x, gamma1, tq=128, tk=128))
    assert jnp.allclose(out1a, ref1, atol=3e-2, rtol=3e-2), "mismatch (tq=tk=128)"

    # (b) default (larger) tiles
    out1b = jax.block_until_ready(ssam_pallas(x, gamma1))
    assert jnp.allclose(out1b, ref1, atol=3e-2, rtol=3e-2), "mismatch (default tiles)"

    # Non-multiple-of-128 spatial size -> padding + key-masking path (N = 100 -> 128).
    x2 = jax.random.normal(jax.random.PRNGKey(0), (2, 4, 10, 10), dtype=jnp.float32)
    gamma2 = jnp.array([0.7], dtype=jnp.float32)
    out2 = jax.block_until_ready(ssam_pallas(x2, gamma2))
    ref2 = ssam_reference(x2, gamma2)
    assert jnp.allclose(out2, ref2, atol=3e-2, rtol=3e-2), "mismatch (padded N)"

    print("KERNEL_OK")
</pallas_src>

<mosaic_0001>
module attributes {stable_mosaic.version = 11 : i64} {
  func.func @_ssam_kernel(%arg0: i32, %arg1: i32, %arg2: i32, %arg3: memref<1xf32, #tpu.memory_space<smem>>, %arg4: memref<1x4x256xf32, #tpu.memory_space<vmem>>, %arg5: memref<1x4x256xbf16, #tpu.memory_space<vmem>>, %arg6: memref<1x4x256xf32, #tpu.memory_space<vmem>>, %arg7: memref<1x256xf32, #tpu.memory_space<vmem>>, %arg8: memref<1x256xf32, #tpu.memory_space<vmem>>, %arg9: memref<4x256xf32, #tpu.memory_space<vmem>>) attributes {dimension_semantics = [#tpu.dimension_semantics<parallel>, #tpu.dimension_semantics<parallel>, #tpu.dimension_semantics<arbitrary>], iteration_bounds = array<i64: 2, 1, 1>, scalar_prefetch = 0 : i64, scratch_operands = 3 : i64, tpu.core_type = #tpu.core_type<tc>, window_params = [{transform_indices = @transform_0, window_bounds = array<i64: 1>}, {transform_indices = @transform_1, window_bounds = array<i64: 1, 4, 256>}, {transform_indices = @transform_2, window_bounds = array<i64: 1, 4, 256>}, {transform_indices = @transform_3, window_bounds = array<i64: 1, 4, 256>}]} {
    %c0_i32 = arith.constant 0 : i32
    %0 = arith.cmpi eq, %arg2, %c0_i32 : i32
    %1 = arith.extui %0 : i1 to i32
    %c0_i32_0 = arith.constant 0 : i32
    %2 = arith.cmpi ne, %1, %c0_i32_0 : i32
    scf.if %2 {
      %cst_27 = arith.constant 0xFF800000 : f32
      %40 = vector.broadcast %cst_27 : f32 to vector<1x256xf32>
      %c0_28 = arith.constant 0 : index
      %c0_29 = arith.constant 0 : index
      %41 = vector.load %arg7[%c0_28, %c0_29] : memref<1x256xf32, #tpu.memory_space<vmem>>, vector<1x256xf32>
      tpu.vector_store %arg7[%c0_28, %c0_29], %40 {strides = array<i32>} : memref<1x256xf32, #tpu.memory_space<vmem>>, vector<1x256xf32>,
      %cst_30 = arith.constant 0.000000e+00 : f32
      %42 = vector.broadcast %cst_30 : f32 to vector<1x256xf32>
      %c0_31 = arith.constant 0 : index
      %c0_32 = arith.constant 0 : index
      %43 = vector.load %arg8[%c0_31, %c0_32] : memref<1x256xf32, #tpu.memory_space<vmem>>, vector<1x256xf32>
      tpu.vector_store %arg8[%c0_31, %c0_32], %42 {strides = array<i32>} : memref<1x256xf32, #tpu.memory_space<vmem>>, vector<1x256xf32>,
      %cst_33 = arith.constant 0.000000e+00 : f32
      %44 = vector.broadcast %cst_33 : f32 to vector<4x256xf32>
      %c0_34 = arith.constant 0 : index
      %c0_35 = arith.constant 0 : index
      %45 = vector.load %arg9[%c0_34, %c0_35] : memref<4x256xf32, #tpu.memory_space<vmem>>, vector<4x256xf32>
      tpu.vector_store %arg9[%c0_34, %c0_35], %44 {strides = array<i32>} : memref<4x256xf32, #tpu.memory_space<vmem>>, vector<4x256xf32>,
    } else {
    }
    %c0 = arith.constant 0 : index
    %c0_1 = arith.constant 0 : index
    %c0_2 = arith.constant 0 : index
    %3 = vector.load %arg4[%c0, %c0_1, %c0_2] : memref<1x4x256xf32, #tpu.memory_space<vmem>>, vector<1x4x256xf32>
    %4 = vector.shape_cast %3 : vector<1x4x256xf32> to vector<4x256xf32>
    %c0_3 = arith.constant 0 : index
    %c0_4 = arith.constant 0 : index
    %c0_5 = arith.constant 0 : index
    %5 = vector.load %arg5[%c0_3, %c0_4, %c0_5] : memref<1x4x256xbf16, #tpu.memory_space<vmem>>, vector<1x4x256xbf16>
    %6 = vector.shape_cast %5 : vector<1x4x256xbf16> to vector<4x256xbf16>
    %7 = arith.truncf %4 : vector<4x256xf32> to vector<4x256xbf16>
    %cst = arith.constant dense<0.000000e+00> : vector<256x256xf32>
    %8 = tpu.matmul %6, %7, %cst {dimension_numbers = #tpu.dot_dimension_numbers<[0], [0], [1], [1], [0, 1, 1, 1], [], []>} : vector<4x256xbf16>, vector<4x256xbf16>, vector<256x256xf32> -> vector<256x256xf32>
    %cst_6 = arith.constant dense<0x7F800000> : vector<256xf32>
    %9 = vector.multi_reduction <minimumf>, %8, %cst_6 [0] : vector<256x256xf32> to vector<256xf32>
    %10 = vector.shape_cast %9 : vector<256xf32> to vector<1x256xf32>
    %cst_7 = arith.constant 0.000000e+00 : f32
    %11 = vector.broadcast %cst_7 : f32 to vector<1x256xf32>
    %12 = arith.subf %11, %10 : vector<1x256xf32>
    %c0_8 = arith.constant 0 : index
    %c0_9 = arith.constant 0 : index
    %13 = vector.load %arg7[%c0_8, %c0_9] : memref<1x256xf32, #tpu.memory_space<vmem>>, vector<1x256xf32>
    %14 = arith.maximumf %13, %12 : vector<1x256xf32>
    %c0_10 = arith.constant 0 : index
    %c0_11 = arith.constant 0 : index
    %15 = vector.load %arg7[%c0_10, %c0_11] : memref<1x256xf32, #tpu.memory_space<vmem>>, vector<1x256xf32>
    %16 = arith.subf %15, %14 : vector<1x256xf32>
    %17 = math.exp %16 : vector<1x256xf32>
    %cst_12 = arith.constant 0.000000e+00 : f32
    %18 = vector.broadcast %cst_12 : f32 to vector<1x256xf32>
    %19 = arith.subf %18, %14 : vector<1x256xf32>
    %20 = vector.broadcast %19 : vector<1x256xf32> to vector<256x256xf32>
    %21 = arith.subf %20, %8 : vector<256x256xf32>
    %22 = math.exp %21 : vector<256x256xf32>
    %c0_13 = arith.constant 0 : index
    %c0_14 = arith.constant 0 : index
    %23 = vector.load %arg8[%c0_13, %c0_14] : memref<1x256xf32, #tpu.memory_space<vmem>>, vector<1x256xf32>
    %24 = arith.mulf %17, %23 : vector<1x256xf32>
    %cst_15 = arith.constant dense<0.000000e+00> : vector<256xf32>
    %25 = vector.multi_reduction <add>, %22, %cst_15 [0] : vector<256x256xf32> to vector<256xf32>
    %26 = vector.shape_cast %25 : vector<256xf32> to vector<1x256xf32>
    %27 = arith.addf %24, %26 : vector<1x256xf32>
    %c0_16 = arith.constant 0 : index
    %c0_17 = arith.constant 0 : index
    %28 = vector.load %arg8[%c0_16, %c0_17] : memref<1x256xf32, #tpu.memory_space<vmem>>, vector<1x256xf32>
    tpu.vector_store %arg8[%c0_16, %c0_17], %27 {strides = array<i32>} : memref<1x256xf32, #tpu.memory_space<vmem>>, vector<1x256xf32>,
    %c0_18 = arith.constant 0 : index
    %c0_19 = arith.constant 0 : index
    %29 = vector.load %arg9[%c0_18, %c0_19] : memref<4x256xf32, #tpu.memory_space<vmem>>, vector<4x256xf32>
    %30 = vector.broadcast %17 : vector<1x256xf32> to vector<4x256xf32>
    %31 = arith.mulf %30, %29 : vector<4x256xf32>
    %32 = arith.truncf %22 : vector<256x256xf32> to vector<256x256xbf16>
    %cst_20 = arith.constant dense<0.000000e+00> : vector<4x256xf32>
    %33 = tpu.matmul %6, %32, %cst_20 {dimension_numbers = #tpu.dot_dimension_numbers<[1], [0], [0], [1], [0, 0, 1, 1], [], []>} : vector<4x256xbf16>, vector<256x256xbf16>, vector<4x256xf32> -> vector<4x256xf32>
    %34 = arith.addf %31, %33 : vector<4x256xf32>
    %c0_21 = arith.constant 0 : index
    %c0_22 = arith.constant 0 : index
    %35 = vector.load %arg9[%c0_21, %c0_22] : memref<4x256xf32, #tpu.memory_space<vmem>>, vector<4x256xf32>
    tpu.vector_store %arg9[%c0_21, %c0_22], %34 {strides = array<i32>} : memref<4x256xf32, #tpu.memory_space<vmem>>, vector<4x256xf32>,
    %c0_23 = arith.constant 0 : index
    %c0_24 = arith.constant 0 : index
    %36 = vector.load %arg7[%c0_23, %c0_24] : memref<1x256xf32, #tpu.memory_space<vmem>>, vector<1x256xf32>
    tpu.vector_store %arg7[%c0_23, %c0_24], %14 {strides = array<i32>} : memref<1x256xf32, #tpu.memory_space<vmem>>, vector<1x256xf32>,
    %c0_i32_25 = arith.constant 0 : i32
    %37 = arith.cmpi eq, %arg2, %c0_i32_25 : i32
    %38 = arith.extui %37 : i1 to i32
    %c0_i32_26 = arith.constant 0 : i32
    %39 = arith.cmpi ne, %38, %c0_i32_26 : i32
    scf.if %39 {
      %c0_27 = arith.constant 0 : index
      %c0_28 = arith.constant 0 : index
      %40 = vector.load %arg8[%c0_27, %c0_28] : memref<1x256xf32, #tpu.memory_space<vmem>>, vector<1x256xf32>
      %41 = tpu.reciprocal %40 {approx = true} : vector<1x256xf32> -> vector<1x256xf32>
      %c0_29 = arith.constant 0 : index
      %c0_30 = arith.constant 0 : index
      %42 = vector.load %arg9[%c0_29, %c0_30] : memref<4x256xf32, #tpu.memory_space<vmem>>, vector<4x256xf32>
      %43 = vector.broadcast %41 : vector<1x256xf32> to vector<4x256xf32>
      %44 = arith.mulf %42, %43 : vector<4x256xf32>
      %c0_31 = arith.constant 0 : index
      %45 = memref.load %arg3[%c0_31] : memref<1xf32, #tpu.memory_space<smem>>
      %46 = vector.broadcast %45 : f32 to vector<4x256xf32>
      %47 = arith.mulf %46, %44 : vector<4x256xf32>
      %48 = arith.addf %47, %4 : vector<4x256xf32>
      %c0_32 = arith.constant 0 : index
      %c0_33 = arith.constant 0 : index
      %c0_34 = arith.constant 0 : index
      %49 = vector.load %arg6[%c0_32, %c0_33, %c0_34] : memref<1x4x256xf32, #tpu.memory_space<vmem>>, vector<1x4x256xf32>
      %50 = vector.shape_cast %49 : vector<1x4x256xf32> to vector<4x256xf32>
      %51 = vector.shape_cast %48 : vector<4x256xf32> to vector<1x4x256xf32>
      tpu.vector_store %arg6[%c0_32, %c0_33, %c0_34], %51 {strides = array<i32>} : memref<1x4x256xf32, #tpu.memory_space<vmem>>, vector<1x4x256xf32>,
    } else {
    }
    return
  }
  func.func @transform_0(%arg0: i32, %arg1: i32, %arg2: i32) -> i32 {
    %c0_i32 = arith.constant 0 : i32
    %c0_i32_0 = arith.constant 0 : i32
    return %c0_i32 : i32
  }
  func.func @transform_1(%arg0: i32, %arg1: i32, %arg2: i32) -> (i32, i32, i32) {
    %c0_i32 = arith.constant 0 : i32
    %c0_i32_0 = arith.constant 0 : i32
    return %arg0, %c0_i32, %arg1 : i32, i32, i32
  }
  func.func @transform_2(%arg0: i32, %arg1: i32, %arg2: i32) -> (i32, i32, i32) {
    %c0_i32 = arith.constant 0 : i32
    %c0_i32_0 = arith.constant 0 : i32
    return %arg0, %c0_i32, %arg2 : i32, i32, i32
  }
  func.func @transform_3(%arg0: i32, %arg1: i32, %arg2: i32) -> (i32, i32, i32) {
    %c0_i32 = arith.constant 0 : i32
    %c0_i32_0 = arith.constant 0 : i32
    return %arg0, %c0_i32, %arg1 : i32, i32, i32
  }
}

</mosaic_0001>

<llo_original>
// kernel: tpu_custom_call.1
$region0: #{tpu_custom_call.1}
  #allocation0 [shape = 'u32[]', space=smem, size = 0x4, offset = 0x4, fixed_abs, tag = 'smem constant byte address 0x4 - core index']
  #allocation1 [shape = 'u32[144,128]{1,0:T(1,128)}', space=vmem, size = 0x12000, scoped, tag = 'internal scratch']
  #allocation2 [shape = 'f32[1,256]{1,0:T(1,128)}', space=vmem, size = 0x400, scoped, tag = 'scratch operand']
  #allocation3 [shape = 'f32[1,256]{1,0:T(1,128)}', space=vmem, size = 0x400, scoped, tag = 'scratch operand']
  #allocation4 [shape = 'f32[4,256]{1,0:T(4,128)}', space=vmem, size = 0x1000, scoped, tag = 'scratch operand']
  #allocation5 [shape = 'f32[1]{0:T(128)S(6)}', space=smem, size = 0x200, scoped, tag = 'scoped memory for tpu_custom_call.1']
  %s0 = inlined_call_operand.<no memory space> [shape: f32[1], index: 0, kind: input, shape index: {}]
  %s1 = inlined_call_operand.hbm [shape: f32[2,4,256], index: 1, kind: input, shape index: {}]
  %s2 = inlined_call_operand.hbm [shape: bf16[2,4,256], index: 2, kind: input, shape index: {}]
  %s3 = inlined_call_operand.hbm [shape: f32[2,4,256], index: 3, kind: output, shape index: {}]
  %s4 = sld [smem:[#allocation0]]
  $region61: #{tpu_custom_call.1} parent=0
    _
  %s6 = ssub.s32 1, %s4
  %s7 = scalar_select 0, %s6, %s4
  %8 = sst [smem:[#allocation5]] %s0
  $region1: #{tpu_custom_call.1} parent=0
    #allocation6 [shape = 'u8[8192]{0}', space=vmem, size = 0x2000, scoped, tag = 'input window, operand 1']
    #allocation7 [shape = 's32[2]{0}', space=sflag, size = 0x8, scoped, tag = 'scoped memory for tpu_custom_call.1']
    #allocation8 [shape = 's32[2]{0}', space=sflag, size = 0x8, scoped, tag = 'scoped memory for tpu_custom_call.1']
    #allocation9 [shape = 'u8[4096]{0}', space=vmem, size = 0x1000, scoped, tag = 'input window, operand 2']
    #allocation10 [shape = 's32[2]{0}', space=sflag, size = 0x8, scoped, tag = 'scoped memory for tpu_custom_call.1']
    #allocation11 [shape = 'u8[8192]{0}', space=vmem, size = 0x2000, scoped, tag = 'output window, operand 0']
    %9 = vsyncpa [#allocation7], 0
    %s10 = scalar_lea.sflag [#allocation7], 1
    %11 = vsyncpa %s10, 0
    %12 = vsyncpa [#allocation10], 0
    %s13 = scalar_lea.sflag [#allocation10], 1
    %14 = vsyncpa %s13, 0
    %15 = vsyncpa [#allocation8], 0
    %s16 = scalar_lea.sflag [#allocation8], 1
    %17 = vsyncpa %s16, 0
    loop: start=0, step=1, limit=4
    $region2: #{tpu_custom_call.1} parent=1 // loop_pre_header
      _
    $region3: #{tpu_custom_call.1} parent=1 // loop_header
      %s19 = sphi 0, %s23
      %p20 = scmp.ge.s32.totalorder %s19, 4
      %s26 = sphi 0, %s45
      %s27 = sphi 0, %s41
      %s28 = sphi 0, %s37
      %s29 = sphi 0, %s26
      %s30 = sphi 0, %s27
      %s31 = sphi 0, %s28
      %s32 = sphi 0, %s29
      %s33 = sphi 0, %s30
      %s34 = sphi 0, %s31
      %s46 = sphi 0, %s46
      %s48 = sphi 0, %s46
      %s49 = sphi 0, %s48
      %s63 = sphi 0, %s49
      %s71 = sphi 0, %s73
      %s74 = sphi 0, %s71
      %s75 = sphi 0, %s74
      %s91 = sphi 0, %s75
      %s99 = sphi 0, %s101
      %s102 = sphi 0, %s99
      %s103 = sphi 0, %s102
      %s119 = sphi 0, %s103
      %s127 = sphi 0, %s129
      %s130 = sphi 0, %s127
      %s131 = sphi 0, %s130
      %s147 = sphi 0, %s131
    $region4: #{tpu_custom_call.1} parent=1 // loop_header_branch
      %22 = sbr.rel (%p20) target = $region8
    $region5: #{tpu_custom_call.1} parent=1 // loop_body
      %s24 = ssub.s32 %s19, 1
      %s25 = ssub.s32 %s19, 2
      %s35 = sadd.s32 1, %s28
      %p36 = scmp.ge.s32.totalorder %s35, 1
      %s37 = scalar_select %p36, 0, %s35
      %s38 = sadd.s32 1, %s27
      %s39 = scalar_select %p36, %s38, %s27
      %p40 = scmp.ge.s32.totalorder %s39, 1
      %s41 = scalar_select %p40, 0, %s39
      %s42 = sadd.s32 1, %s26
      %s43 = scalar_select %p40, %s42, %s26
      %p44 = scmp.ge.s32.totalorder %s43, 2
      %s45 = scalar_select %p44, 0, %s43
      %s47 = sadd.s32 %s46, 1
      %p50 = scmp.eq.s32.totalorder %s19, 1
      %p51 = scmp.ne.s32.totalorder %s46, %s48
      %p52 = scmp.eq.s32.totalorder %s19, 0
      %p53 = por %p51, %p52
      %p54 = scmp.ne.s32.totalorder %s46, %s48
      %p55 = scmp.eq.s32.totalorder %s24, 1
      %p56 = por %p54, %p55
      %p57 = scmp.ne.s32.totalorder %s48, %s49
      %p58 = scmp.eq.s32.totalorder %s24, 0
      %p59 = por %p57, %p58
      %p60 = scmp.ne.s32.totalorder %s48, %s49
      %p61 = scmp.eq.s32.totalorder %s25, 1
      %p62 = por %p60, %p61
      %p64 = scmp.ne.s32.totalorder %s49, %s63
      %p65 = scmp.eq.s32.totalorder %s25, 0
      %p66 = por %p64, %p65
      %s67 = ssub.s32 %s26, %s45
      %s68 = ssub.s32 %s27, %s41
      %s69 = sor.u32 %s67, %s68
      %p70 = scmp.eq.s32.totalorder %s69, 0
      %s72 = sadd.s32 %s71, 1
      %s73 = scalar_select %p70, %s71, %s72
      %p76 = pneg %p70
      %p77 = scmp.eq.s32.totalorder %s19, 1
      %p78 = por %p76, %p77
      %p79 = scmp.ne.s32.totalorder %s71, %s74
      %p80 = scmp.eq.s32.totalorder %s19, 0
      %p81 = por %p79, %p80
      %p82 = scmp.ne.s32.totalorder %s71, %s74
      %p83 = scmp.eq.s32.totalorder %s24, 1
      %p84 = por %p82, %p83
      %p85 = scmp.ne.s32.totalorder %s74, %s75
      %p86 = scmp.eq.s32.totalorder %s24, 0
      %p87 = por %p85, %p86
      %p88 = scmp.ne.s32.totalorder %s74, %s75
      %p89 = scmp.eq.s32.totalorder %s25, 1
      %p90 = por %p88, %p89
      %p92 = scmp.ne.s32.totalorder %s75, %s91
      %p93 = scmp.eq.s32.totalorder %s25, 0
      %p94 = por %p92, %p93
      %s95 = ssub.s32 %s26, %s45
      %s96 = ssub.s32 %s28, %s37
      %s97 = sor.u32 %s95, %s96
      %p98 = scmp.eq.s32.totalorder %s97, 0
      %s100 = sadd.s32 %s99, 1
      %s101 = scalar_select %p98, %s99, %s100
      %p104 = pneg %p98
      %p105 = scmp.eq.s32.totalorder %s19, 1
      %p106 = por %p104, %p105
      %p107 = scmp.ne.s32.totalorder %s99, %s102
      %p108 = scmp.eq.s32.totalorder %s19, 0
      %p109 = por %p107, %p108
      %p110 = scmp.ne.s32.totalorder %s99, %s102
      %p111 = scmp.eq.s32.totalorder %s24, 1
      %p112 = por %p110, %p111
      %p113 = scmp.ne.s32.totalorder %s102, %s103
      %p114 = scmp.eq.s32.totalorder %s24, 0
      %p115 = por %p113, %p114
      %p116 = scmp.ne.s32.totalorder %s102, %s103
      %p117 = scmp.eq.s32.totalorder %s25, 1
      %p118 = por %p116, %p117
      %p120 = scmp.ne.s32.totalorder %s103, %s119
      %p121 = scmp.eq.s32.totalorder %s25, 0
      %p122 = por %p120, %p121
      %s123 = ssub.s32 %s26, %s45
      %s124 = ssub.s32 %s27, %s41
      %s125 = sor.u32 %s123, %s124
      %p126 = scmp.eq.s32.totalorder %s125, 0
      %s128 = sadd.s32 %s127, 1
      %s129 = scalar_select %p126, %s127, %s128
      %p132 = pneg %p126
      %p133 = scmp.eq.s32.totalorder %s19, 1
      %p134 = por %p132, %p133
      %p135 = scmp.ne.s32.totalorder %s127, %s130
      %p136 = scmp.eq.s32.totalorder %s19, 0
      %p137 = por %p135, %p136
      %p138 = scmp.ne.s32.totalorder %s127, %s130
      %p139 = scmp.eq.s32.totalorder %s24, 1
      %p140 = por %p138, %p139
      %p141 = scmp.ne.s32.totalorder %s130, %s131
      %p142 = scmp.eq.s32.totalorder %s24, 0
      %p143 = por %p141, %p142
      %p144 = scmp.ne.s32.totalorder %s130, %s131
      %p145 = scmp.eq.s32.totalorder %s25, 1
      %p146 = por %p144, %p145
      %p148 = scmp.ne.s32.totalorder %s131, %s147
      %p149 = scmp.eq.s32.totalorder %s25, 0
      %p150 = por %p148, %p149
      %p151 = scmp.le.s32.totalorder 1, %s19
      %p152 = scmp.lt.s32.totalorder %s19, 3
      %p153 = pnand %p151, %p152
      %p154 = pneg %p153
      // Predicated region
      $region9: #{tpu_custom_call.1} parent=5 // pred_check
        _
      $region10: #{tpu_custom_call.1} parent=5 // pred_check_branch
        %156 = sbr.rel (%p153) target = $region12
      $region11: #{tpu_custom_call.1} parent=5 // pred_region
        %s157 = ssub.s32 %s19, 1
        // Predicated region
        $region13: #{tpu_custom_call.1} parent=11 // pred_check
          %p158 = pneg %p59
        $region14: #{tpu_custom_call.1} parent=11 // pred_check_branch
          %160 = sbr.rel (%p158) target = $region16
        $region15: #{tpu_custom_call.1} parent=11 // pred_region
          _
        $region16: #{tpu_custom_call.1} parent=11 // pred_fallthru
          _
      $region12: #{tpu_custom_call.1} parent=5 // pred_fallthru
        _
      %p161 = scmp.lt.s32.totalorder %s19, 2
      // Predicated region
      $region17: #{tpu_custom_call.1} parent=5 // pred_check
        %p162 = pneg %p161
      $region18: #{tpu_custom_call.1} parent=5 // pred_check_branch
        %164 = sbr.rel (%p162) target = $region20
      $region19: #{tpu_custom_call.1} parent=5 // pred_region
        // Predicated region
        $region21: #{tpu_custom_call.1} parent=19 // pred_check
          %p165 = pneg %p81
        $region22: #{tpu_custom_call.1} parent=19 // pred_check_branch
          %167 = sbr.rel (%p165) target = $region24
        $region23: #{tpu_custom_call.1} parent=19 // pred_region
          %s168 = sand.u32 %s71, 1
          %s169 = scalar_lea.sflag [#allocation7], %s168
          %s170 = sand.u32 %s71, 1
          %s171 = smul.addr %s170, 8
          %s172 = scalar_lea.vmem [#allocation6], %s171
          %s173 = smul.u32 2, %s27
          %s175 = ssub.s32 128, 128
          %176 = vsyncadd %s169, %s175
          %s177 = smul.addr %s26, 2
          %s178 = sadd.s32 %s173, %s177
          %s179 = smul.addr %s178, 64
          %s180 = scalar_lea.hbm %s1, %s179
          %s182 = sshll.u32 %s172, 4
          %s183 = int_to_ptr.vmem [resolvable:$true] %s182
          %185 = dma.hbm_to_vmem [thread:$0]  %s180, 128, %s183, %s169
        $region24: #{tpu_custom_call.1} parent=19 // pred_fallthru
          _
        // Predicated region
        $region25: #{tpu_custom_call.1} parent=19 // pred_check
          %p186 = pneg %p109
        $region26: #{tpu_custom_call.1} parent=19 // pred_check_branch
          %188 = sbr.rel (%p186) target = $region28
        $region27: #{tpu_custom_call.1} parent=19 // pred_region
          %s189 = sand.u32 %s99, 1
          %s190 = scalar_lea.sflag [#allocation10], %s189
          %s191 = sand.u32 %s99, 1
          %s192 = smul.addr %s191, 4
          %s193 = scalar_lea.vmem [#allocation9], %s192
          %s194 = smul.u32 2, %s28
          %s196 = ssub.s32 64, 64
          %197 = vsyncadd %s190, %s196
          %s198 = smul.addr %s26, 2
          %s199 = sadd.s32 %s194, %s198
          %s200 = smul.addr %s199, 32
          %s201 = scalar_lea.hbm %s2, %s200
          %s203 = sshll.u32 %s193, 4
          %s204 = int_to_ptr.vmem [resolvable:$true] %s203
          %206 = dma.hbm_to_vmem [thread:$0]  %s201, 64, %s204, %s190
        $region28: #{tpu_custom_call.1} parent=19 // pred_fallthru
          _
      $region20: #{tpu_custom_call.1} parent=5 // pred_fallthru
        _
      %p207 = scmp.le.s32.totalorder 1, %s19
      %p208 = scmp.lt.s32.totalorder %s19, 3
      %p209 = pnand %p207, %p208
      %p210 = pneg %p209
      // Predicated region
      $region29: #{tpu_custom_call.1} parent=5 // pred_check
        _
      $region30: #{tpu_custom_call.1} parent=5 // pred_check_branch
        %212 = sbr.rel (%p209) target = $region32
      $region31: #{tpu_custom_call.1} parent=5 // pred_region
        %s213 = ssub.s32 %s19, 1
        %s214 = sand.u32 %s74, 1
        %s215 = scalar_lea.sflag [#allocation7], %s214
        %s216 = sand.u32 %s74, 1
        %s217 = smul.addr %s216, 8
        %s218 = scalar_lea.vmem [#allocation6], %s217
        // Predicated region
        $region33: #{tpu_custom_call.1} parent=31 // pred_check
          %p219 = pneg %p87
        $region34: #{tpu_custom_call.1} parent=31 // pred_check_branch
          %221 = sbr.rel (%p219) target = $region36
        $region35: #{tpu_custom_call.1} parent=31 // pred_region
          %222 = dma.done %s215, 128
        $region36: #{tpu_custom_call.1} parent=31 // pred_fallthru
          _
        %s223 = sand.u32 %s102, 1
        %s224 = scalar_lea.sflag [#allocation10], %s223
        %s225 = sand.u32 %s102, 1
        %s226 = smul.addr %s225, 4
        %s227 = scalar_lea.vmem [#allocation9], %s226
        // Predicated region
        $region37: #{tpu_custom_call.1} parent=31 // pred_check
          %p228 = pneg %p115
        $region38: #{tpu_custom_call.1} parent=31 // pred_check_branch
          %230 = sbr.rel (%p228) target = $region40
        $region39: #{tpu_custom_call.1} parent=31 // pred_region
          %231 = dma.done %s224, 64
        $region40: #{tpu_custom_call.1} parent=31 // pred_fallthru
          _
        %p232 = pneg %p59
        %p233 = pneg %p56
        %s234 = sand.u32 %s74, 1
        %s235 = scalar_lea.sflag [#allocation7], %s234
        %s236 = sand.u32 %s74, 1
        %s237 = smul.addr %s236, 8
        %s238 = scalar_lea.vmem [#allocation6], %s237
        %p239 = pneg %p87
        %p240 = pneg %p84
        %s241 = sand.u32 %s102, 1
        %s242 = scalar_lea.sflag [#allocation10], %s241
        %s243 = sand.u32 %s102, 1
        %s244 = smul.addr %s243, 4
        %s245 = scalar_lea.vmem [#allocation9], %s244
        %p246 = pneg %p115
        %p247 = pneg %p112
        %p248 = pneg %p143
        %p249 = pneg %p140
        %s250 = sand.u32 %s130, 1
        %s251 = scalar_lea.sflag [#allocation8], %s250
        %s252 = sand.u32 %s130, 1
        %s253 = smul.addr %s252, 8
        %s254 = scalar_lea.vmem [#allocation11], %s253
        %s255 = smul.u32 2, %s30
        %s256 = smul.u32 2, %s31
        %s257 = smul.u32 2, %s30
        %p259 = scmp.eq.s32.totalorder %s31, 0
        // Predicated region
        $region41: #{tpu_custom_call.1} parent=31 // pred_check
          %p260 = pneg %p259
        $region42: #{tpu_custom_call.1} parent=31 // pred_check_branch
          %262 = sbr.rel (%p260) target = $region44
        $region43: #{tpu_custom_call.1} parent=31 // pred_region
          %v263 = vlaneseq
          %vm264 = vcmp.ge.s32.totalorder %v263, 0
          %vm265 = vcmp.lt.s32.totalorder %v263, 256
          %vm266 = vmand %vm264, %vm265
          %267 = vst.msk [vmem:[#allocation2] sm:$0x3] %vm266, -inf
          %268 = vst.msk [vmem:[#allocation3] sm:$0x3] %vm266, 0.0
          %269 = vst [vmem:[#allocation4] sm:$0xff] 0.0
        $region44: #{tpu_custom_call.1} parent=31 // pred_fallthru
          _
        %v270 = vld [vmem:[%s218] sm:$0xff]
        %v271 = vld [vmem:[%s227] sm:$0xf]
        %v273 = vcombine.high %v270, %v270
        %v275 = vpack.c.bf16 %v270, %v270
        %v276 = vpack.c.bf16 %v273, %v273
        %v279 = vunpack.c.l.s4 1983009808
        %v280 = vunpack.c.0.s8 %v279
        %v281 = vlaneseq
        %v282 = vshrl.u32 %v281, 7
        %v283 = vsub.s32 %v280, %v282
        %v284 = vrot.slane %v271, %v283
        %v285 = vcombine.high %v284, %v284
        %288 = vxpose.xlu0.c.b16.start [1/8] %v284, 128
        %289 = vxpose.xlu0.c.b16.cont [2/8] 0, 128
        %290 = vxpose.xlu0.c.b16.cont [3/8] 0, 128
        %291 = vxpose.xlu0.c.b16.cont [4/8] 0, 128
        %292 = vxpose.xlu0.c.b16.cont [5/8] 0, 128
        %293 = vxpose.xlu0.c.b16.cont [6/8] 0, 128
        %294 = vxpose.xlu0.c.b16.cont [7/8] 0, 128
        %295 = vxpose.xlu0.c.b16.end [8/8] 0, 128
        %v296 = vpop.trf.xlu0
        %v297 = vpop.trf.xlu0
        %v298 = vpop.trf.xlu0
        %v299 = vpop.trf.xlu0
        %v300 = vpop.trf.xlu0
        %v301 = vpop.trf.xlu0
        %v302 = vpop.trf.xlu0
        %v303 = vpop.trf.xlu0
        %304 = vxpose.xlu0.c.b16.start [1/8] %v285, 128
        %305 = vxpose.xlu0.c.b16.cont [2/8] 0, 128
        %306 = vxpose.xlu0.c.b16.cont [3/8] 0, 128
        %307 = vxpose.xlu0.c.b16.cont [4/8] 0, 128
        %308 = vxpose.xlu0.c.b16.cont [5/8] 0, 128
        %309 = vxpose.xlu0.c.b16.cont [6/8] 0, 128
        %310 = vxpose.xlu0.c.b16.cont [7/8] 0, 128
        %311 = vxpose.xlu0.c.b16.end [8/8] 0, 128
        %v312 = vpop.trf.xlu0
        %v313 = vpop.trf.xlu0
        %v314 = vpop.trf.xlu0
        %v315 = vpop.trf.xlu0
        %v316 = vpop.trf.xlu0
        %v317 = vpop.trf.xlu0
        %v318 = vpop.trf.xlu0
        %v319 = vpop.trf.xlu0
        %vm320 = vcmask 31744
        %v322 = vsel %vm320, %v296, 0
        %v325 = vsel %vm320, %v297, 0
        %v328 = vsel %vm320, %v298, 0
        %v331 = vsel %vm320, %v299, 0
        %v334 = vsel %vm320, %v300, 0
        %v337 = vsel %vm320, %v301, 0
        %v340 = vsel %vm320, %v302, 0
        %v343 = vsel %vm320, %v303, 0
        %v346 = vsel %vm320, %v312, 0
        %v349 = vsel %vm320, %v313, 0
        %v352 = vsel %vm320, %v314, 0
        %v355 = vsel %vm320, %v315, 0
        %v358 = vsel %vm320, %v316, 0
        %v361 = vsel %vm320, %v317, 0
        %v364 = vsel %vm320, %v318, 0
        %v367 = vsel %vm320, %v319, 0
        %vm369 = vcmask 1041408
        %v371 = vsel %vm369, %v275, 0
        %v374 = vsel %vm369, %v276, 0
        %376 = vmatprep.subr.bf16.mxu0 %v374
        %377 = vmatpush1.bf16.msra.mxu0 %v371
        %378 = vmatprep.subr.bf16.mxu0 0
        %379 = vmatpush1.bf16.msra.mxu0 0
        %380 = vmatprep.subr.bf16.mxu0 0
        %381 = vmatpush1.bf16.msra.mxu0 0
        %382 = vmatprep.subr.bf16.mxu0 0
        %383 = vmatpush1.bf16.msra.mxu0 0
        %384 = vmatprep.subr.bf16.mxu0 0
        %385 = vmatpush1.bf16.msra.mxu0 0
        %386 = vmatprep.subr.bf16.mxu0 0
        %387 = vmatpush1.bf16.msra.mxu0 0
        %388 = vmatprep.subr.bf16.mxu0 0
        %389 = vmatpush1.bf16.msra.mxu0 0
        %390 = vmatprep.subr.bf16.mxu0 0
        %391 = vmatpush1.bf16.msra.mxu0 0
        %392 = vmatprep.subr.bf16.mxu0 0
        %393 = vmatpush1.bf16.msra.mxu0 0
        %394 = vmatprep.subr.bf16.mxu0 0
        %395 = vmatpush1.bf16.msra.mxu0 0
        %396 = vmatprep.subr.bf16.mxu0 0
        %397 = vmatpush1.bf16.msra.mxu0 0
        %398 = vmatprep.subr.bf16.mxu0 0
        %399 = vmatpush1.bf16.msra.mxu0 0
        %400 = vmatprep.subr.bf16.mxu0 0
        %401 = vmatpush1.bf16.msra.mxu0 0
        %402 = vmatprep.subr.bf16.mxu0 0
        %403 = vmatpush1.bf16.msra.mxu0 0
        %404 = vmatprep.subr.bf16.mxu0 0
        %405 = vmatpush1.bf16.msra.mxu0 0
        %406 = vmatprep.subr.bf16.mxu0 0
        %407 = vmatpush1.bf16.msra.mxu0 0
        %408 = vmatprep.mubr.bf16.mxu0 0
        %409 = vmatmul.mubr.bf16.gmra.mrb[0].mxu0 %v322
        %v410 = vpop.f32.mrb[0].mxu0
        %v411 = vadd.f32 0.0, %v410
        %v412 = vpop.f32.mrb[0].mxu0
        %v413 = vadd.f32 0.0, %v412
        %v414 = vpop.f32.mrb[0].mxu0
        %v415 = vadd.f32 0.0, %v414
        %v416 = vpop.f32.mrb[0].mxu0
        %v417 = vadd.f32 0.0, %v416
        %418 = vmatprep.mubr.bf16.mxu0 0
        %419 = vmatmul.mubr.bf16.gmra.mrb[0].mxu0 %v325
        %v420 = vpop.f32.mrb[0].mxu0
        %v421 = vadd.f32 0.0, %v420
        %v422 = vpop.f32.mrb[0].mxu0
        %v423 = vadd.f32 0.0, %v422
        %v424 = vpop.f32.mrb[0].mxu0
        %v425 = vadd.f32 0.0, %v424
        %v426 = vpop.f32.mrb[0].mxu0
        %v427 = vadd.f32 0.0, %v426
        %428 = vmatprep.mubr.bf16.mxu0 0
        %429 = vmatmul.mubr.bf16.gmra.mrb[0].mxu0 %v328
        %v430 = vpop.f32.mrb[0].mxu0
        %v431 = vadd.f32 0.0, %v430
        %v432 = vpop.f32.mrb[0].mxu0
        %v433 = vadd.f32 0.0, %v432
        %v434 = vpop.f32.mrb[0].mxu0
        %v435 = vadd.f32 0.0, %v434
        %v436 = vpop.f32.mrb[0].mxu0
        %v437 = vadd.f32 0.0, %v436
        %438 = vmatprep.mubr.bf16.mxu0 0
        %439 = vmatmul.mubr.bf16.gmra.mrb[0].mxu0 %v331
        %v440 = vpop.f32.mrb[0].mxu0
        %v441 = vadd.f32 0.0, %v440
        %v442 = vpop.f32.mrb[0].mxu0
        %v443 = vadd.f32 0.0, %v442
        %v444 = vpop.f32.mrb[0].mxu0
        %v445 = vadd.f32 0.0, %v444
        %v446 = vpop.f32.mrb[0].mxu0
        %v447 = vadd.f32 0.0, %v446
        %448 = vmatprep.mubr.bf16.mxu0 0
        %449 = vmatmul.mubr.bf16.gmra.mrb[0].mxu0 %v334
        %v450 = vpop.f32.mrb[0].mxu0
        %v451 = vadd.f32 0.0, %v450
        %v452 = vpop.f32.mrb[0].mxu0
        %v453 = vadd.f32 0.0, %v452
        %v454 = vpop.f32.mrb[0].mxu0
        %v455 = vadd.f32 0.0, %v454
        %v456 = vpop.f32.mrb[0].mxu0
        %v457 = vadd.f32 0.0, %v456
        %458 = vmatprep.mubr.bf16.mxu0 0
        %459 = vmatmul.mubr.bf16.gmra.mrb[0].mxu0 %v337
        %v460 = vpop.f32.mrb[0].mxu0
        %v461 = vadd.f32 0.0, %v460
        %v462 = vpop.f32.mrb[0].mxu0
        %v463 = vadd.f32 0.0, %v462
        %v464 = vpop.f32.mrb[0].mxu0
        %v465 = vadd.f32 0.0, %v464
        %v466 = vpop.f32.mrb[0].mxu0
        %v467 = vadd.f32 0.0, %v466
        %468 = vmatprep.mubr.bf16.mxu0 0
        %469 = vmatmul.mubr.bf16.gmra.mrb[0].mxu0 %v340
        %v470 = vpop.f32.mrb[0].mxu0
        %v471 = vadd.f32 0.0, %v470
        %v472 = vpop.f32.mrb[0].mxu0
        %v473 = vadd.f32 0.0, %v472
        %v474 = vpop.f32.mrb[0].mxu0
        %v475 = vadd.f32 0.0, %v474
        %v476 = vpop.f32.mrb[0].mxu0
        %v477 = vadd.f32 0.0, %v476
        %478 = vmatprep.mubr.bf16.mxu0 0
        %479 = vmatmul.mubr.bf16.gmra.mrb[0].mxu0 %v343
        %v480 = vpop.f32.mrb[0].mxu0
        %v481 = vadd.f32 0.0, %v480
        %v482 = vpop.f32.mrb[0].mxu0
        %v483 = vadd.f32 0.0, %v482
        %v484 = vpop.f32.mrb[0].mxu0
        %v485 = vadd.f32 0.0, %v484
        %v486 = vpop.f32.mrb[0].mxu0
        %v487 = vadd.f32 0.0, %v486
        %488 = vmatprep.mubr.bf16.mxu0 0
        %489 = vmatmul.mubr.bf16.gmra.mrb[0].mxu0 %v346
        %v490 = vpop.f32.mrb[0].mxu0
        %v491 = vadd.f32 0.0, %v490
        %v492 = vpop.f32.mrb[0].mxu0
        %v493 = vadd.f32 0.0, %v492
        %v494 = vpop.f32.mrb[0].mxu0
        %v495 = vadd.f32 0.0, %v494
        %v496 = vpop.f32.mrb[0].mxu0
        %v497 = vadd.f32 0.0, %v496
        %498 = vmatprep.mubr.bf16.mxu0 0
        %499 = vmatmul.mubr.bf16.gmra.mrb[0].mxu0 %v349
        %v500 = vpop.f32.mrb[0].mxu0
        %v501 = vadd.f32 0.0, %v500
        %v502 = vpop.f32.mrb[0].mxu0
        %v503 = vadd.f32 0.0, %v502
        %v504 = vpop.f32.mrb[0].mxu0
        %v505 = vadd.f32 0.0, %v504
        %v506 = vpop.f32.mrb[0].mxu0
        %v507 = vadd.f32 0.0, %v506
        %508 = vmatprep.mubr.bf16.mxu0 0
        %509 = vmatmul.mubr.bf16.gmra.mrb[0].mxu0 %v352
        %v510 = vpop.f32.mrb[0].mxu0
        %v511 = vadd.f32 0.0, %v510
        %v512 = vpop.f32.mrb[0].mxu0
        %v513 = vadd.f32 0.0, %v512
        %v514 = vpop.f32.mrb[0].mxu0
        %v515 = vadd.f32 0.0, %v514
        %v516 = vpop.f32.mrb[0].mxu0
        %v517 = vadd.f32 0.0, %v516
        %518 = vmatprep.mubr.bf16.mxu0 0
        %519 = vmatmul.mubr.bf16.gmra.mrb[0].mxu0 %v355
        %v520 = vpop.f32.mrb[0].mxu0
        %v521 = vadd.f32 0.0, %v520
        %v522 = vpop.f32.mrb[0].mxu0
        %v523 = vadd.f32 0.0, %v522
        %v524 = vpop.f32.mrb[0].mxu0
        %v525 = vadd.f32 0.0, %v524
        %v526 = vpop.f32.mrb[0].mxu0
        %v527 = vadd.f32 0.0, %v526
        %528 = vmatprep.mubr.bf16.mxu0 0
        %529 = vmatmul.mubr.bf16.gmra.mrb[0].mxu0 %v358
        %v530 = vpop.f32.mrb[0].mxu0
        %v531 = vadd.f32 0.0, %v530
        %v532 = vpop.f32.mrb[0].mxu0
        %v533 = vadd.f32 0.0, %v532
        %v534 = vpop.f32.mrb[0].mxu0
        %v535 = vadd.f32 0.0, %v534
        %v536 = vpop.f32.mrb[0].mxu0
        %v537 = vadd.f32 0.0, %v536
        %538 = vmatprep.mubr.bf16.mxu0 0
        %539 = vmatmul.mubr.bf16.gmra.mrb[0].mxu0 %v361
        %v540 = vpop.f32.mrb[0].mxu0
        %v541 = vadd.f32 0.0, %v540
        %v542 = vpop.f32.mrb[0].mxu0
        %v543 = vadd.f32 0.0, %v542
        %v544 = vpop.f32.mrb[0].mxu0
        %v545 = vadd.f32 0.0, %v544
        %v546 = vpop.f32.mrb[0].mxu0
        %v547 = vadd.f32 0.0, %v546
        %548 = vmatprep.mubr.bf16.mxu0 0
        %549 = vmatmul.mubr.bf16.gmra.mrb[0].mxu0 %v364
        %v550 = vpop.f32.mrb[0].mxu0
        %v551 = vadd.f32 0.0, %v550
        %v552 = vpop.f32.mrb[0].mxu0
        %v553 = vadd.f32 0.0, %v552
        %v554 = vpop.f32.mrb[0].mxu0
        %v555 = vadd.f32 0.0, %v554
        %v556 = vpop.f32.mrb[0].mxu0
        %v557 = vadd.f32 0.0, %v556
        %558 = vmatprep.mubr.bf16.mxu0 0
        %559 = vmatmul.mubr.bf16.gmra.mrb[0].mxu0 %v367
        %v560 = vpop.f32.mrb[0].mxu0
        %v561 = vadd.f32 0.0, %v560
        %v562 = vpop.f32.mrb[0].mxu0
        %v563 = vadd.f32 0.0, %v562
        %v564 = vpop.f32.mrb[0].mxu0
        %v565 = vadd.f32 0.0, %v564
        %v566 = vpop.f32.mrb[0].mxu0
        %v567 = vadd.f32 0.0, %v566
        %568 = vdwg.mxu0
        %v569 = vmin.f32 %v411, %v421
        %v570 = vmin.f32 %v415, %v425
        %v571 = vmin.f32 %v569, %v431
        %v572 = vmin.f32 %v570, %v435
        %v573 = vmin.f32 %v571, %v441
        %v574 = vmin.f32 %v572, %v445
        %v575 = vmin.f32 %v573, %v451
        %v576 = vmin.f32 %v574, %v455
        %v577 = vmin.f32 %v575, %v461
        %v578 = vmin.f32 %v576, %v465
        %v579 = vmin.f32 %v577, %v471
        %v580 = vmin.f32 %v578, %v475
        %v581 = vmin.f32 %v579, %v481
        %v582 = vmin.f32 %v580, %v485
        %v583 = vmin.f32 %v581, %v491
        %v584 = vmin.f32 %v582, %v495
        %v585 = vmin.f32 %v583, %v501
        %v586 = vmin.f32 %v584, %v505
        %v587 = vmin.f32 %v585, %v511
        %v588 = vmin.f32 %v586, %v515
        %v589 = vmin.f32 %v587, %v521
        %v590 = vmin.f32 %v588, %v525
        %v591 = vmin.f32 %v589, %v531
        %v592 = vmin.f32 %v590, %v535
        %v593 = vmin.f32 %v591, %v541
        %v594 = vmin.f32 %v592, %v545
        %v595 = vmin.f32 %v593, %v551
        %v596 = vmin.f32 %v594, %v555
        %v597 = vmin.f32 %v595, %v561
        %v598 = vmin.f32 %v596, %v565
        %v599 = vmin.f32 %v597, %v598
        %v600 = vrot.slane %v599, 4
        %v601 = vmin.f32 %v599, %v600
        %v602 = vrot.slane %v601, 2
        %v603 = vmin.f32 %v601, %v602
        %v604 = vrot.slane %v603, 1
        %v605 = vmin.f32 %v603, %v604
        %v606 = vmin.f32 %v413, %v423
        %v607 = vmin.f32 %v417, %v427
        %v608 = vmin.f32 %v606, %v433
        %v609 = vmin.f32 %v607, %v437
        %v610 = vmin.f32 %v608, %v443
        %v611 = vmin.f32 %v609, %v447
        %v612 = vmin.f32 %v610, %v453
        %v613 = vmin.f32 %v611, %v457
        %v614 = vmin.f32 %v612, %v463
        %v615 = vmin.f32 %v613, %v467
        %v616 = vmin.f32 %v614, %v473
        %v617 = vmin.f32 %v615, %v477
        %v618 = vmin.f32 %v616, %v483
        %v619 = vmin.f32 %v617, %v487
        %v620 = vmin.f32 %v618, %v493
        %v621 = vmin.f32 %v619, %v497
        %v622 = vmin.f32 %v620, %v503
        %v623 = vmin.f32 %v621, %v507
        %v624 = vmin.f32 %v622, %v513
        %v625 = vmin.f32 %v623, %v517
        %v626 = vmin.f32 %v624, %v523
        %v627 = vmin.f32 %v625, %v527
        %v628 = vmin.f32 %v626, %v533
        %v629 = vmin.f32 %v627, %v537
        %v630 = vmin.f32 %v628, %v543
        %v631 = vmin.f32 %v629, %v547
        %v632 = vmin.f32 %v630, %v553
        %v633 = vmin.f32 %v631, %v557
        %v634 = vmin.f32 %v632, %v563
        %v635 = vmin.f32 %v633, %v567
        %v636 = vmin.f32 %v634, %v635
        %v637 = vrot.slane %v636, 4
        %v638 = vmin.f32 %v636, %v637
        %v639 = vrot.slane %v638, 2
        %v640 = vmin.f32 %v638, %v639
        %v641 = vrot.slane %v640, 1
        %v642 = vmin.f32 %v640, %v641
        %v643 = vsub.f32 0.0, %v605
        %v644 = vsub.f32 0.0, %v642
        %v645 = vld [vmem:[#allocation2] sm:$0x3]
        %v648 = vcombine.low %v643, %v644
        %v650 = vunpack.c.l.s4 1966171168
        %v651 = vunpack.c.0.s8 %v650
        %v652 = vlaneseq
        %v653 = vshrl.u32 %v652, 7
        %v654 = vsub.s32 %v651, %v653
        %v655 = vrot.slane %v648, %v654
        %v657 = vunpack.c.l.s4 1966171168
        %v658 = vunpack.c.0.s8 %v657
        %v659 = vlaneseq
        %v660 = vshrl.u32 %v659, 7
        %v661 = vsub.s32 %v658, %v660
        %v662 = vrot.slane %v655, %v661
        %v664 = vmax.f32 %v645, %v662
        %v665 = vsub.f32 %v645, %v664
        %v666 = vmul.f32 %v665, 1.442695
        %v667 = vpow.pop %v666
        %v668 = vsub.f32 0.0, %v664
        %v670 = vlaneseq
        %v671 = vshrl.u32 %v670, 7
        %v672 = vsub.s32 0, %v671
        %v673 = vrot.slane %v668, %v672
        %v674 = vlaneseq
        %v675 = vshrl.u32 %v674, 7
        %v676 = vsub.s32 1, %v675
        %v677 = vrot.slane %v668, %v676
        %v680 = vsub.f32 %v673, %v411
        %v681 = vsub.f32 %v677, %v413
        %v682 = vsub.f32 %v673, %v415
        %v683 = vsub.f32 %v677, %v417
        %v684 = vsub.f32 %v673, %v421
        %v685 = vsub.f32 %v677, %v423
        %v686 = vsub.f32 %v673, %v425
        %v687 = vsub.f32 %v677, %v427
        %v688 = vsub.f32 %v673, %v431
        %v689 = vsub.f32 %v677, %v433
        %v690 = vsub.f32 %v673, %v435
        %v691 = vsub.f32 %v677, %v437
        %v692 = vsub.f32 %v673, %v441
        %v693 = vsub.f32 %v677, %v443
        %v694 = vsub.f32 %v673, %v445
        %v695 = vsub.f32 %v677, %v447
        %v696 = vsub.f32 %v673, %v451
        %v697 = vsub.f32 %v677, %v453
        %v698 = vsub.f32 %v673, %v455
        %v699 = vsub.f32 %v677, %v457
        %v700 = vsub.f32 %v673, %v461
        %v701 = vsub.f32 %v677, %v463
        %v702 = vsub.f32 %v673, %v465
        %v703 = vsub.f32 %v677, %v467
        %v704 = vsub.f32 %v673, %v471
        %v705 = vsub.f32 %v677, %v473
        %v706 = vsub.f32 %v673, %v475
        %v707 = vsub.f32 %v677, %v477
        %v708 = vsub.f32 %v673, %v481
        %v709 = vsub.f32 %v677, %v483
        %v710 = vsub.f32 %v673, %v485
        %v711 = vsub.f32 %v677, %v487
        %v712 = vsub.f32 %v673, %v491
        %v713 = vsub.f32 %v677, %v493
        %v714 = vsub.f32 %v673, %v495
        %v715 = vsub.f32 %v677, %v497
        %v716 = vsub.f32 %v673, %v501
        %v717 = vsub.f32 %v677, %v503
        %v718 = vsub.f32 %v673, %v505
        %v719 = vsub.f32 %v677, %v507
        %v720 = vsub.f32 %v673, %v511
        %v721 = vsub.f32 %v677, %v513
        %v722 = vsub.f32 %v673, %v515
        %v723 = vsub.f32 %v677, %v517
        %v724 = vsub.f32 %v673, %v521
        %v725 = vsub.f32 %v677, %v523
        %v726 = vsub.f32 %v673, %v525
        %v727 = vsub.f32 %v677, %v527
        %v728 = vsub.f32 %v673, %v531
        %v729 = vsub.f32 %v677, %v533
        %v730 = vsub.f32 %v673, %v535
        %v731 = vsub.f32 %v677, %v537
        %v732 = vsub.f32 %v673, %v541
        %v733 = vsub.f32 %v677, %v543
        %v734 = vsub.f32 %v673, %v545
        %v735 = vsub.f32 %v677, %v547
        %v736 = vsub.f32 %v673, %v551
        %v737 = vsub.f32 %v677, %v553
        %v738 = vsub.f32 %v673, %v555
        %v739 = vsub.f32 %v677, %v557
        %v740 = vsub.f32 %v673, %v561
        %v741 = vsub.f32 %v677, %v563
        %v742 = vsub.f32 %v673, %v565
        %v743 = vsub.f32 %v677, %v567
        %v744 = vmul.f32 %v680, 1.442695
        %v745 = vpow.pop %v744
        %v746 = vmul.f32 %v681, 1.442695
        %v747 = vpow.pop %v746
        %v748 = vmul.f32 %v682, 1.442695
        %v749 = vpow.pop %v748
        %v750 = vmul.f32 %v683, 1.442695
        %v751 = vpow.pop %v750
        %v752 = vmul.f32 %v684, 1.442695
        %v753 = vpow.pop %v752
        %v754 = vmul.f32 %v685, 1.442695
        %v755 = vpow.pop %v754
        %v756 = vmul.f32 %v686, 1.442695
        %v757 = vpow.pop %v756
        %v758 = vmul.f32 %v687, 1.442695
        %v759 = vpow.pop %v758
        %v760 = vmul.f32 %v688, 1.442695
        %v761 = vpow.pop %v760
        %v762 = vmul.f32 %v689, 1.442695
        %v763 = vpow.pop %v762
        %v764 = vmul.f32 %v690, 1.442695
        %v765 = vpow.pop %v764
        %v766 = vmul.f32 %v691, 1.442695
        %v767 = vpow.pop %v766
        %v768 = vmul.f32 %v692, 1.442695
        %v769 = vpow.pop %v768
        %v770 = vmul.f32 %v693, 1.442695
        %v771 = vpow.pop %v770
        %v772 = vmul.f32 %v694, 1.442695
        %v773 = vpow.pop %v772
        %v774 = vmul.f32 %v695, 1.442695
        %v775 = vpow.pop %v774
        %v776 = vmul.f32 %v696, 1.442695
        %v777 = vpow.pop %v776
        %v778 = vmul.f32 %v697, 1.442695
        %v779 = vpow.pop %v778
        %v780 = vmul.f32 %v698, 1.442695
        %v781 = vpow.pop %v780
        %v782 = vmul.f32 %v699, 1.442695
        %v783 = vpow.pop %v782
        %v784 = vmul.f32 %v700, 1.442695
        %v785 = vpow.pop %v784
        %v786 = vmul.f32 %v701, 1.442695
        %v787 = vpow.pop %v786
        %v788 = vmul.f32 %v702, 1.442695
        %v789 = vpow.pop %v788
        %v790 = vmul.f32 %v703, 1.442695
        %v791 = vpow.pop %v790
        %v792 = vmul.f32 %v704, 1.442695
        %v793 = vpow.pop %v792
        %v794 = vmul.f32 %v705, 1.442695
        %v795 = vpow.pop %v794
        %v796 = vmul.f32 %v706, 1.442695
        %v797 = vpow.pop %v796
        %v798 = vmul.f32 %v707, 1.442695
        %v799 = vpow.pop %v798
        %v800 = vmul.f32 %v708, 1.442695
        %v801 = vpow.pop %v800
        %v802 = vmul.f32 %v709, 1.442695
        %v803 = vpow.pop %v802
        %v804 = vmul.f32 %v710, 1.442695
        %v805 = vpow.pop %v804
        %v806 = vmul.f32 %v711, 1.442695
        %v807 = vpow.pop %v806
        %v808 = vmul.f32 %v712, 1.442695
        %v809 = vpow.pop %v808
        %v810 = vmul.f32 %v713, 1.442695
        %v811 = vpow.pop %v810
        %v812 = vmul.f32 %v714, 1.442695
        %v813 = vpow.pop %v812
        %v814 = vmul.f32 %v715, 1.442695
        %v815 = vpow.pop %v814
        %v816 = vmul.f32 %v716, 1.442695
        %v817 = vpow.pop %v816
        %v818 = vmul.f32 %v717, 1.442695
        %v819 = vpow.pop %v818
        %v820 = vmul.f32 %v718, 1.442695
        %v821 = vpow.pop %v820
        %v822 = vmul.f32 %v719, 1.442695
        %v823 = vpow.pop %v822
        %v824 = vmul.f32 %v720, 1.442695
        %v825 = vpow.pop %v824
        %v826 = vmul.f32 %v721, 1.442695
        %v827 = vpow.pop %v826
        %v828 = vmul.f32 %v722, 1.442695
        %v829 = vpow.pop %v828
        %v830 = vmul.f32 %v723, 1.442695
        %v831 = vpow.pop %v830
        %v832 = vmul.f32 %v724, 1.442695
        %v833 = vpow.pop %v832
        %v834 = vmul.f32 %v725, 1.442695
        %v835 = vpow.pop %v834
        %v836 = vmul.f32 %v726, 1.442695
        %v837 = vpow.pop %v836
        %v838 = vmul.f32 %v727, 1.442695
        %v839 = vpow.pop %v838
        %v840 = vmul.f32 %v728, 1.442695
        %v841 = vpow.pop %v840
        %v842 = vmul.f32 %v729, 1.442695
        %v843 = vpow.pop %v842
        %v844 = vmul.f32 %v730, 1.442695
        %v845 = vpow.pop %v844
        %v846 = vmul.f32 %v731, 1.442695
        %v847 = vpow.pop %v846
        %v848 = vmul.f32 %v732, 1.442695
        %v849 = vpow.pop %v848
        %v850 = vmul.f32 %v733, 1.442695
        %v851 = vpow.pop %v850
        %v852 = vmul.f32 %v734, 1.442695
        %v853 = vpow.pop %v852
        %v854 = vmul.f32 %v735, 1.442695
        %v855 = vpow.pop %v854
        %v856 = vmul.f32 %v736, 1.442695
        %v857 = vpow.pop %v856
        %v858 = vmul.f32 %v737, 1.442695
        %v859 = vpow.pop %v858
        %v860 = vmul.f32 %v738, 1.442695
        %v861 = vpow.pop %v860
        %v862 = vmul.f32 %v739, 1.442695
        %v863 = vpow.pop %v862
        %v864 = vmul.f32 %v740, 1.442695
        %v865 = vpow.pop %v864
        %v866 = vmul.f32 %v741, 1.442695
        %v867 = vpow.pop %v866
        %v868 = vmul.f32 %v742, 1.442695
        %v869 = vpow.pop %v868
        %v870 = vmul.f32 %v743, 1.442695
        %v871 = vpow.pop %v870
        %v872 = vld [vmem:[#allocation3] sm:$0x3]
        %v873 = vmul.f32 %v667, %v872
        %v874 = vadd.f32 %v745, %v749
        %v875 = vadd.f32 %v874, %v753
        %v876 = vadd.f32 %v875, %v757
        %v877 = vadd.f32 %v876, %v761
        %v878 = vadd.f32 %v877, %v765
        %v879 = vadd.f32 %v878, %v769
        %v880 = vadd.f32 %v879, %v773
        %v881 = vadd.f32 %v880, %v777
        %v882 = vadd.f32 %v881, %v781
        %v883 = vadd.f32 %v882, %v785
        %v884 = vadd.f32 %v883, %v789
        %v885 = vadd.f32 %v884, %v793
        %v886 = vadd.f32 %v885, %v797
        %v887 = vadd.f32 %v886, %v801
        %v888 = vadd.f32 %v887, %v805
        %v889 = vadd.f32 %v888, %v809
        %v890 = vadd.f32 %v889, %v813
        %v891 = vadd.f32 %v890, %v817
        %v892 = vadd.f32 %v891, %v821
        %v893 = vadd.f32 %v892, %v825
        %v894 = vadd.f32 %v893, %v829
        %v895 = vadd.f32 %v894, %v833
        %v896 = vadd.f32 %v895, %v837
        %v897 = vadd.f32 %v896, %v841
        %v898 = vadd.f32 %v897, %v845
        %v899 = vadd.f32 %v898, %v849
        %v900 = vadd.f32 %v899, %v853
        %v901 = vadd.f32 %v900, %v857
        %v902 = vadd.f32 %v901, %v861
        %v903 = vadd.f32 %v902, %v865
        %v904 = vadd.f32 %v903, %v869
        %v905 = vrot.slane %v904, 4
        %v906 = vadd.f32 %v904, %v905
        %v907 = vrot.slane %v906, 2
        %v908 = vadd.f32 %v906, %v907
        %v909 = vrot.slane %v908, 1
        %v910 = vadd.f32 %v908, %v909
        %v911 = vadd.f32 %v747, %v751
        %v912 = vadd.f32 %v911, %v755
        %v913 = vadd.f32 %v912, %v759
        %v914 = vadd.f32 %v913, %v763
        %v915 = vadd.f32 %v914, %v767
        %v916 = vadd.f32 %v915, %v771
        %v917 = vadd.f32 %v916, %v775
        %v918 = vadd.f32 %v917, %v779
        %v919 = vadd.f32 %v918, %v783
        %v920 = vadd.f32 %v919, %v787
        %v921 = vadd.f32 %v920, %v791
        %v922 = vadd.f32 %v921, %v795
        %v923 = vadd.f32 %v922, %v799
        %v924 = vadd.f32 %v923, %v803
        %v925 = vadd.f32 %v924, %v807
        %v926 = vadd.f32 %v925, %v811
        %v927 = vadd.f32 %v926, %v815
        %v928 = vadd.f32 %v927, %v819
        %v929 = vadd.f32 %v928, %v823
        %v930 = vadd.f32 %v929, %v827
        %v931 = vadd.f32 %v930, %v831
        %v932 = vadd.f32 %v931, %v835
        %v933 = vadd.f32 %v932, %v839
        %v934 = vadd.f32 %v933, %v843
        %v935 = vadd.f32 %v934, %v847
        %v936 = vadd.f32 %v935, %v851
        %v937 = vadd.f32 %v936, %v855
        %v938 = vadd.f32 %v937, %v859
        %v939 = vadd.f32 %v938, %v863
        %v940 = vadd.f32 %v939, %v867
        %v941 = vadd.f32 %v940, %v871
        %v942 = vrot.slane %v941, 4
        %v943 = vadd.f32 %v941, %v942
        %v944 = vrot.slane %v943, 2
        %v945 = vadd.f32 %v943, %v944
        %v946 = vrot.slane %v945, 1
        %v947 = vadd.f32 %v945, %v946
        %v950 = vcombine.low %v910, %v947
        %v952 = vunpack.c.l.s4 1966171168
        %v953 = vunpack.c.0.s8 %v952
        %v954 = vlaneseq
        %v955 = vshrl.u32 %v954, 7
        %v956 = vsub.s32 %v953, %v955
        %v957 = vrot.slane %v950, %v956
        %v959 = vunpack.c.l.s4 1966171168
        %v960 = vunpack.c.0.s8 %v959
        %v961 = vlaneseq
        %v962 = vshrl.u32 %v961, 7
        %v963 = vsub.s32 %v960, %v962
        %v964 = vrot.slane %v957, %v963
        %v966 = vadd.f32 %v873, %v964
        %v967 = vlaneseq
        %vm968 = vcmp.ge.s32.totalorder %v967, 0
        %vm969 = vcmp.lt.s32.totalorder %v967, 256
        %vm970 = vmand %vm968, %vm969
        %971 = vst.msk [vmem:[#allocation3] sm:$0x3] %vm970, %v966
        %v972 = vld [vmem:[#allocation4] sm:$0xff]
        %v974 = vlaneseq
        %v975 = vshrl.u32 %v974, 7
        %v976 = vsub.s32 0, %v975
        %v977 = vrot.slane %v667, %v976
        %v978 = vlaneseq
        %v979 = vshrl.u32 %v978, 7
        %v980 = vsub.s32 1, %v979
        %v981 = vrot.slane %v667, %v980
        %v985 = vcombine.high %v972, %v972
        %v987 = vmul.f32 %v977, %v972
        %v988 = vmul.f32 %v981, %v985
        %v989 = vpack.c.bf16 %v749, %v745
        %v990 = vpack.c.bf16 %v751, %v747
        %v991 = vpack.c.bf16 %v757, %v753
        %v992 = vpack.c.bf16 %v759, %v755
        %v993 = vpack.c.bf16 %v765, %v761
        %v994 = vpack.c.bf16 %v767, %v763
        %v995 = vpack.c.bf16 %v773, %v769
        %v996 = vpack.c.bf16 %v775, %v771
        %v997 = vpack.c.bf16 %v781, %v777
        %v998 = vpack.c.bf16 %v783, %v779
        %v999 = vpack.c.bf16 %v789, %v785
        %v1000 = vpack.c.bf16 %v791, %v787
        %v1001 = vpack.c.bf16 %v797, %v793
        %v1002 = vpack.c.bf16 %v799, %v795
        %v1003 = vpack.c.bf16 %v805, %v801
        %v1004 = vpack.c.bf16 %v807, %v803
        %v1005 = vpack.c.bf16 %v813, %v809
        %v1006 = vpack.c.bf16 %v815, %v811
        %v1007 = vpack.c.bf16 %v821, %v817
        %v1008 = vpack.c.bf16 %v823, %v819
        %v1009 = vpack.c.bf16 %v829, %v825
        %v1010 = vpack.c.bf16 %v831, %v827
        %v1011 = vpack.c.bf16 %v837, %v833
        %v1012 = vpack.c.bf16 %v839, %v835
        %v1013 = vpack.c.bf16 %v845, %v841
        %v1014 = vpack.c.bf16 %v847, %v843
        %v1015 = vpack.c.bf16 %v853, %v849
        %v1016 = vpack.c.bf16 %v855, %v851
        %v1017 = vpack.c.bf16 %v861, %v857
        %v1018 = vpack.c.bf16 %v863, %v859
        %v1019 = vpack.c.bf16 %v869, %v865
        %v1020 = vpack.c.bf16 %v871, %v867
        %1021 = vmatprep.subr.bf16.mxu0 %v990
        %1022 = vmatpush1.bf16.msra.mxu0 %v989
        %1023 = vmatprep.subr.bf16.mxu0 %v992
        %1024 = vmatpush1.bf16.msra.mxu0 %v991
        %1025 = vmatprep.subr.bf16.mxu0 %v994
        %1026 = vmatpush1.bf16.msra.mxu0 %v993
        %1027 = vmatprep.subr.bf16.mxu0 %v996
        %1028 = vmatpush1.bf16.msra.mxu0 %v995
        %1029 = vmatprep.subr.bf16.mxu0 %v998
        %1030 = vmatpush1.bf16.msra.mxu0 %v997
        %1031 = vmatprep.subr.bf16.mxu0 %v1000
        %1032 = vmatpush1.bf16.msra.mxu0 %v999
        %1033 = vmatprep.subr.bf16.mxu0 %v1002
        %1034 = vmatpush1.bf16.msra.mxu0 %v1001
        %1035 = vmatprep.subr.bf16.mxu0 %v1004
        %1036 = vmatpush1.bf16.msra.mxu0 %v1003
        %1037 = vmatprep.subr.bf16.mxu0 %v1006
        %1038 = vmatpush1.bf16.msra.mxu0 %v1005
        %1039 = vmatprep.subr.bf16.mxu0 %v1008
        %1040 = vmatpush1.bf16.msra.mxu0 %v1007
        %1041 = vmatprep.subr.bf16.mxu0 %v1010
        %1042 = vmatpush1.bf16.msra.mxu0 %v1009
        %1043 = vmatprep.subr.bf16.mxu0 %v1012
        %1044 = vmatpush1.bf16.msra.mxu0 %v1011
        %1045 = vmatprep.subr.bf16.mxu0 %v1014
        %1046 = vmatpush1.bf16.msra.mxu0 %v1013
        %1047 = vmatprep.subr.bf16.mxu0 %v1016
        %1048 = vmatpush1.bf16.msra.mxu0 %v1015
        %1049 = vmatprep.subr.bf16.mxu0 %v1018
        %1050 = vmatpush1.bf16.msra.mxu0 %v1017
        %1051 = vmatprep.subr.bf16.mxu0 %v1020
        %1052 = vmatpush1.bf16.msra.mxu0 %v1019
        %1053 = vmatprep.mubr.bf16.mxu0 %v285
        %1054 = vmatmul.mubr.bf16.gmra.mrb[0].mxu0 %v284
        %v1055 = vpop.f32.mrb[0].mxu0
        %v1056 = vadd.f32 0.0, %v1055
        %v1057 = vpop.f32.mrb[0].mxu0
        %v1058 = vadd.f32 0.0, %v1057
        %v1059 = vpop.f32.mrb[0].mxu0
        %v1060 = vpop.f32.mrb[0].mxu0
        %1061 = vdwg.mxu0
        %v1062 = vadd.f32 %v987, %v1056
        %v1063 = vadd.f32 %v988, %v1058
        %v1066 = vcombine.low %v1062, %v1063
        %1068 = vst [vmem:[#allocation4] sm:$0xff] %v1066
        %1069 = vst.msk [vmem:[#allocation2] sm:$0x3] %vm970, %v664
        // Predicated region
        $region45: #{tpu_custom_call.1} parent=31 // pred_check
          %p1070 = pneg %p259
        $region46: #{tpu_custom_call.1} parent=31 // pred_check_branch
          %1072 = sbr.rel (%p1070) target = $region48
        $region47: #{tpu_custom_call.1} parent=31 // pred_region
          %v1073 = vld [vmem:[#allocation3] sm:$0x3]
          %v1074 = vrcp.pop %v1073
          %v1075 = vld [vmem:[#allocation4] sm:$0xff]
          %v1077 = vlaneseq
          %v1078 = vshrl.u32 %v1077, 7
          %v1079 = vsub.s32 0, %v1078
          %v1080 = vrot.slane %v1074, %v1079
          %v1081 = vlaneseq
          %v1082 = vshrl.u32 %v1081, 7
          %v1083 = vsub.s32 1, %v1082
          %v1084 = vrot.slane %v1074, %v1083
          %v1085 = vcombine.low %v1080, %v1084
          %v1087 = vmul.f32 %v1075, %v1085
          %s1088 = sld [smem:[#allocation5]]
          %v1089 = vstv %s1088
          %v1090 = vmul.f32 %v1089, %v1087
          %v1091 = vadd.f32 %v1090, %v270
          %1092 = vst [vmem:[%s254] sm:$0xff] %v1091
        $region48: #{tpu_custom_call.1} parent=31 // pred_fallthru
          _
        %s1093 = sand.u32 %s130, 1
        %s1094 = scalar_lea.sflag [#allocation8], %s1093
        %s1095 = sand.u32 %s130, 1
        %s1096 = smul.addr %s1095, 8
        %s1097 = scalar_lea.vmem [#allocation11], %s1096
        // Predicated region
        $region49: #{tpu_custom_call.1} parent=31 // pred_check
          %p1098 = pneg %p140
        $region50: #{tpu_custom_call.1} parent=31 // pred_check_branch
          %1100 = sbr.rel (%p1098) target = $region52
        $region51: #{tpu_custom_call.1} parent=31 // pred_region
          %s1101 = smul.u32 2, %s30
          %s1103 = ssub.s32 128, 128
          %1104 = vsyncadd %s1094, %s1103
          %s1105 = smul.addr %s29, 2
          %s1106 = sadd.s32 %s1101, %s1105
          %s1107 = smul.addr %s1106, 64
          %s1108 = scalar_lea.hbm %s3, %s1107
          %s1110 = sshll.u32 %s1097, 4
          %s1111 = int_to_ptr.vmem [resolvable:$true] %s1110
          %1113 = dma.vmem_to_hbm [thread:$0]  %s1111, 128, %s1108, %s1094
        $region52: #{tpu_custom_call.1} parent=31 // pred_fallthru
          _
      $region32: #{tpu_custom_call.1} parent=5 // pred_fallthru
        _
      %p1114 = scmp.le.s32.totalorder 2, %s19
      // Predicated region
      $region53: #{tpu_custom_call.1} parent=5 // pred_check
        %p1115 = pneg %p1114
      $region54: #{tpu_custom_call.1} parent=5 // pred_check_branch
        %1117 = sbr.rel (%p1115) target = $region56
      $region55: #{tpu_custom_call.1} parent=5 // pred_region
        %s1118 = ssub.s32 %s19, 2
        // Predicated region
        $region57: #{tpu_custom_call.1} parent=55 // pred_check
          %p1119 = pneg %p146
        $region58: #{tpu_custom_call.1} parent=55 // pred_check_branch
          %1121 = sbr.rel (%p1119) target = $region60
        $region59: #{tpu_custom_call.1} parent=55 // pred_region
          %s1122 = sand.u32 %s131, 1
          %s1123 = scalar_lea.sflag [#allocation8], %s1122
          %s1124 = sand.u32 %s131, 1
          %s1125 = smul.addr %s1124, 8
          %s1126 = scalar_lea.vmem [#allocation11], %s1125
          %1127 = dma.done %s1123, 128
        $region60: #{tpu_custom_call.1} parent=55 // pred_fallthru
          _
      $region56: #{tpu_custom_call.1} parent=5 // pred_fallthru
        _
    $region6: #{tpu_custom_call.1} parent=1 // loop_footer
      %s23 = sadd.s32 1, %s19
    $region7: #{tpu_custom_call.1} parent=1 // loop_footer_branch
      %18 = sbr.rel target = $region3
    $region8: #{tpu_custom_call.1} parent=1 // loop_exit
      _
    %1128 = vsyncpa [#allocation7], 1
    %s1129 = scalar_lea.sflag [#allocation7], 1
    %1130 = vsyncpa %s1129, 1
    %1131 = vsyncpa [#allocation10], 1
    %s1132 = scalar_lea.sflag [#allocation10], 1
    %1133 = vsyncpa %s1132, 1
    %1134 = vsyncpa [#allocation8], 1
    %s1135 = scalar_lea.sflag [#allocation8], 1
    %1136 = vsyncpa %s1135, 1

</llo_original>
